<compile_context>
chip_gen: v6e
topology: v6e:2x2x1
jax: 0.10.0
libtpu: 0.0.40
codegen_flags: <defaults>
</compile_context>

<pallas_src>
import functools

import jax
import jax.numpy as jnp
from jax.experimental import pallas as pl
from jax.experimental.pallas import tpu as pltpu

_TARGET_TILE_BYTES = 6 << 20   # ~6 MiB per x tile; ~4x that pipelined in VMEM
_VMEM_LIMIT_BYTES = 48 << 20   # safe on v5e/v6e (128 MiB) and v7x (64 MiB)


def _fused_lrelu_bias_kernel(x_ref, b_ref, o_ref, *, negative_slope, scale):
    # x_ref: (row_block, col_block); b_ref: (row_block, 1) or (1, col_block).
    y = x_ref[...] + b_ref[...]
    # leaky_relu(y) == max(y, negative_slope * y) for 0 <= negative_slope <= 1
    o_ref[...] = (jnp.maximum(y, y * negative_slope) * scale).astype(o_ref.dtype)


def _fused_lrelu_nobias_kernel(x_ref, o_ref, *, negative_slope, scale):
    y = x_ref[...]
    o_ref[...] = (jnp.maximum(y, y * negative_slope) * scale).astype(o_ref.dtype)


def _round_down(x, m):
    return (x // m) * m


def _choose_blocks(rows, cols, itemsize, target_bytes=_TARGET_TILE_BYTES):
    """Pick (row_block, col_block) obeying the TPU (8, 128) block rules."""
    # Lane (last) dim: full extent, or a multiple of 128.
    if cols < 128 or cols * 8 * itemsize <= target_bytes:
        col_block = cols
    else:
        col_block = max(128, _round_down(target_bytes // (8 * itemsize), 128))
        col_block = min(col_block, _round_down(cols, 128))
    # Sublane (second-last) dim: full extent, or a multiple of 8.
    rb = max(1, target_bytes // max(1, col_block * itemsize))
    if rb >= rows:
        row_block = rows
    else:
        row_block = max(8, _round_down(rb, 8))

    # Megacore: if one tile swallows a non-trivial array, split rows so the
    # grid has >= 2 steps along a "parallel" axis (v7x has 2 TensorCores).
    total_bytes = rows * cols * itemsize
    if (row_block >= rows and col_block >= cols and rows >= 16
            and total_bytes > (1 << 20)):
        row_block = max(8, _round_down((rows + 1) // 2, 8))
    return row_block, col_block


def _run_elementwise(x2d, b2d, negative_slope, scale):
    rows, cols = x2d.shape
    itemsize = jnp.dtype(x2d.dtype).itemsize
    row_block, col_block = _choose_blocks(rows, cols, itemsize)
    grid = (pl.cdiv(rows, row_block), pl.cdiv(cols, col_block))

    in_specs = [pl.BlockSpec((row_block, col_block), lambda i, j: (i, j))]
    operands = [x2d]

    if b2d is None:
        kernel = functools.partial(
            _fused_lrelu_nobias_kernel,
            negative_slope=float(negative_slope), scale=float(scale))
    else:
        kernel = functools.partial(
            _fused_lrelu_bias_kernel,
            negative_slope=float(negative_slope), scale=float(scale))
        if b2d.shape[0] == 1:
            # (1, C*H*W) row-bias: block follows the column index.
            in_specs.append(pl.BlockSpec((1, col_block), lambda i, j: (0, j)))
        else:
            # (N*C, 1) column-bias: resident across the inner (column) axis.
            in_specs.append(pl.BlockSpec((row_block, 1), lambda i, j: (i, 0)))
        operands.append(b2d)

    return pl.pallas_call(
        kernel,
        out_shape=jax.ShapeDtypeStruct((rows, cols), x2d.dtype),
        grid=grid,
        in_specs=in_specs,
        out_specs=pl.BlockSpec((row_block, col_block), lambda i, j: (i, j)),
        compiler_params=pltpu.CompilerParams(
            dimension_semantics=("parallel", "parallel"),
            vmem_limit_bytes=_VMEM_LIMIT_BYTES,
        ),
    )(*operands)


def fused_leaky_relu(x_nchw, bias=None, negative_slope=0.2, scale=2.0 ** 0.5):
    """x_nchw: (N, C, H, W); bias: (C,) or None.

    NOTE: like the PyTorch reference, the applied slope is hardcoded to 0.2
    regardless of `negative_slope`.
    """
    del negative_slope  # reference hardcodes 0.2 inside fused_leaky_relu
    N, C, H, W = x_nchw.shape
    dtype = x_nchw.dtype
    HW = H * W

    if bias is None:
        # No bias: flatten to the most lane-dense slab available.
        x2d = x_nchw.reshape(N, C * HW)
        out2d = _run_elementwise(x2d, None, 0.2, scale)
        return out2d.reshape(N, C, H, W)

    bias = bias.astype(dtype)  # native-dtype compute (no f32 promote)

    if HW >= 128 and HW % 128 == 0:
        # Path A: (N*C, H*W) slab, per-row bias column (N*C, 1).
        x2d = x_nchw.reshape(N * C, HW)
        b2d = jnp.tile(bias, N).reshape(N * C, 1)
    else:
        # Path B: small / non-128-multiple spatial dims -> (N, C*H*W) slab
        # with a (1, C*H*W) bias row, keeping output stores lane-dense.
        x2d = x_nchw.reshape(N, C * HW)
        b2d = jnp.repeat(bias, HW).reshape(1, C * HW)

    out2d = _run_elementwise(x2d, b2d, 0.2, scale)
    return out2d.reshape(N, C, H, W)


class FusedLeakyReLU:
    """JAX mirror of the PyTorch module (bias initialized to zeros)."""

    def __init__(self, channel, bias=True, negative_slope=0.2, scale=2.0 ** 0.5):
        self.bias = jnp.zeros((channel,), dtype=jnp.float32) if bias else None
        self.negative_slope = negative_slope
        self.scale = scale

    def __call__(self, x):
        return fused_leaky_relu(x, self.bias, self.negative_slope, self.scale)


def _ref(x, bias, scale):
    if bias is not None:
        x = x + bias.reshape(1, -1, 1, 1).astype(x.dtype)
    return jnp.where(x >= 0, x, x * 0.2) * scale


if __name__ == "__main__":
    key = jax.random.PRNGKey(0)
    kx, kb, kx2 = jax.random.split(key, 3)
    scale = 2.0 ** 0.5

    # Main case: (2, 4, 16, 16), H*W = 256 -> lane-dense (N*C, H*W) path.
    N, C, H, W = 2, 4, 16, 16
    x = jax.random.normal(kx, (N, C, H, W), dtype=jnp.float32)
    mod = FusedLeakyReLU(C)
    mod.bias = jax.random.normal(kb, (C,), dtype=jnp.float32)
    out = jax.block_until_ready(mod(x))
    assert out.shape == (N, C, H, W)
    assert jnp.allclose(out, _ref(x, mod.bias, scale), atol=1e-5, rtol=1e-5)

    # Small-feature-map case: H*W = 16 < 128 -> (N, C*H*W) lane-dense path.
    x_small = jax.random.normal(kx2, (2, 4, 4, 4), dtype=jnp.float32)
    out_small = jax.block_until_ready(fused_leaky_relu(x_small, mod.bias))
    assert jnp.allclose(out_small, _ref(x_small, mod.bias, scale),
                        atol=1e-5, rtol=1e-5)

    # No-bias case (specialized kernel, no bias DMA / add).
    out_nb = jax.block_until_ready(fused_leaky_relu(x, None))
    assert jnp.allclose(out_nb, _ref(x, None, scale), atol=1e-5, rtol=1e-5)

    print("KERNEL_OK")
</pallas_src>

<mosaic_0001>
module attributes {stable_mosaic.version = 11 : i64} {
  func.func @_fused_lrelu_bias_kernel(%arg0: i32, %arg1: i32, %arg2: memref<8x256xf32, #tpu.memory_space<vmem>>, %arg3: memref<8x1xf32, #tpu.memory_space<vmem>>, %arg4: memref<8x256xf32, #tpu.memory_space<vmem>>) attributes {dimension_semantics = [#tpu.dimension_semantics<parallel>, #tpu.dimension_semantics<parallel>], iteration_bounds = array<i64: 1, 1>, scalar_prefetch = 0 : i64, scratch_operands = 0 : i64, tpu.core_type = #tpu.core_type<tc>, window_params = [{transform_indices = @transform_0, window_bounds = array<i64: 8, 256>}, {transform_indices = @transform_1, window_bounds = array<i64: 8, 1>}, {transform_indices = @transform_2, window_bounds = array<i64: 8, 256>}]} {
    %c0 = arith.constant 0 : index
    %c0_0 = arith.constant 0 : index
    %0 = vector.load %arg2[%c0, %c0_0] : memref<8x256xf32, #tpu.memory_space<vmem>>, vector<8x256xf32>
    %c0_1 = arith.constant 0 : index
    %c0_2 = arith.constant 0 : index
    %1 = vector.load %arg3[%c0_1, %c0_2] : memref<8x1xf32, #tpu.memory_space<vmem>>, vector<8x1xf32>
    %2 = vector.broadcast %1 : vector<8x1xf32> to vector<8x256xf32>
    %3 = arith.addf %0, %2 : vector<8x256xf32>
    %cst = arith.constant 2.000000e-01 : f32
    %4 = vector.broadcast %cst : f32 to vector<8x256xf32>
    %5 = arith.mulf %3, %4 : vector<8x256xf32>
    %6 = arith.maximumf %3, %5 : vector<8x256xf32>
    %cst_3 = arith.constant 1.41421354 : f32
    %7 = vector.broadcast %cst_3 : f32 to vector<8x256xf32>
    %8 = arith.mulf %6, %7 : vector<8x256xf32>
    %c0_4 = arith.constant 0 : index
    %c0_5 = arith.constant 0 : index
    %9 = vector.load %arg4[%c0_4, %c0_5] : memref<8x256xf32, #tpu.memory_space<vmem>>, vector<8x256xf32>
    tpu.vector_store %arg4[%c0_4, %c0_5], %8 {strides = array<i32>} : memref<8x256xf32, #tpu.memory_space<vmem>>, vector<8x256xf32>,
    return
  }
  func.func @transform_0(%arg0: i32, %arg1: i32) -> (i32, i32) {
    %c0_i32 = arith.constant 0 : i32
    return %arg0, %arg1 : i32, i32
  }
  func.func @transform_1(%arg0: i32, %arg1: i32) -> (i32, i32) {
    %c0_i32 = arith.constant 0 : i32
    %c0_i32_0 = arith.constant 0 : i32
    return %arg0, %c0_i32 : i32, i32
  }
  func.func @transform_2(%arg0: i32, %arg1: i32) -> (i32, i32) {
    %c0_i32 = arith.constant 0 : i32
    return %arg0, %arg1 : i32, i32
  }
}

</mosaic_0001>

<llo_original>
// kernel: tpu_custom_call.1
$region0: #{tpu_custom_call.1}
  #allocation0 [shape = 'u32[]', space=smem, size = 0x4, offset = 0x4, fixed_abs, tag = 'smem constant byte address 0x4 - core index']
  #allocation1 [shape = 'u32[144,128]{1,0:T(1,128)}', space=vmem, size = 0x12000, scoped, tag = 'internal scratch']
  %s0 = inlined_call_operand.hbm [shape: f32[8,256], index: 0, kind: input, shape index: {}]
  %s1 = inlined_call_operand.vmem [shape: f32[8,1], index: 1, kind: input, shape index: {}]
  %s2 = inlined_call_operand.hbm [shape: f32[8,256], index: 2, kind: output, shape index: {}]
  %s3 = sld [smem:[#allocation0]]
  $region22: #{tpu_custom_call.1} parent=0
    _
  %s5 = ssub.s32 1, %s3
  %s6 = scalar_select 0, %s5, %s3
  $region1: #{tpu_custom_call.1} parent=0
    #allocation2 [shape = 'u8[8192]{0}', space=vmem, size = 0x2000, scoped, tag = 'input window, operand 0, single buffered']
    #allocation3 [shape = 's32[1]{0}', space=sflag, size = 0x4, scoped, tag = 'scoped memory for tpu_custom_call.1']
    #allocation4 [shape = 's32[1]{0}', space=sflag, size = 0x4, scoped, tag = 'scoped memory for tpu_custom_call.1']
    #allocation5 [shape = 'u8[8192]{0}', space=vmem, size = 0x2000, scoped, tag = 'output window, operand 0, single buffered']
    %7 = vsyncpa [#allocation3], 0
    %8 = vsyncpa [#allocation4], 0
    // Predicated region
    $region2: #{tpu_custom_call.1} parent=1 // pred_check
      _
    $region3: #{tpu_custom_call.1} parent=1 // pred_check_branch
      %10 = sbr.rel (0) target = $region5
    $region4: #{tpu_custom_call.1} parent=1 // pred_region
      %s12 = ssub.s32 256, 256
      %13 = vsyncadd [#allocation3], %s12
      %s15 = sshll.u32 [#allocation2], 4
      %s16 = int_to_ptr.vmem [resolvable:$true] %s15
      %18 = dma.hbm_to_vmem [thread:$0]  %s0, 256, %s16, [#allocation3]
    $region5: #{tpu_custom_call.1} parent=1 // pred_fallthru
      _
    // Predicated region
    $region6: #{tpu_custom_call.1} parent=1 // pred_check
      _
    $region7: #{tpu_custom_call.1} parent=1 // pred_check_branch
      %20 = sbr.rel (0) target = $region9
    $region8: #{tpu_custom_call.1} parent=1 // pred_region
      _
    $region9: #{tpu_custom_call.1} parent=1 // pred_fallthru
      _
    // Predicated region
    $region10: #{tpu_custom_call.1} parent=1 // pred_check
      _
    $region11: #{tpu_custom_call.1} parent=1 // pred_check_branch
      %22 = sbr.rel (0) target = $region13
    $region12: #{tpu_custom_call.1} parent=1 // pred_region
      %23 = dma.done [#allocation3], 256
    $region13: #{tpu_custom_call.1} parent=1 // pred_fallthru
      _
    %v24 = vld [vmem:[#allocation2] sm:$0xff]
    %v25 = vld [vmem:[#allocation2 + $0x8] sm:$0xff]
    %v26 = vld [vmem:[%s1] sm:$0xff]
    %28 = vset.pattern.permute.xlu0 0
    %29 = vperm.xlu0 %28, %v26
    %v30 = vpop.permute.xlu0 %29
    %v32 = vadd.f32 %v24, %v30
    %v33 = vadd.f32 %v25, %v30
    %v34 = vmul.f32 %v32, 0.2
    %v35 = vmul.f32 %v33, 0.2
    %v36 = vmax.f32 %v32, %v34
    %v37 = vmax.f32 %v33, %v35
    %v38 = vmul.f32 %v36, 1.4142135
    %v39 = vmul.f32 %v37, 1.4142135
    %40 = vst [vmem:[#allocation5] sm:$0xff] %v38
    %41 = vst [vmem:[#allocation5 + $0x8] sm:$0xff] %v39
    // Predicated region
    $region14: #{tpu_custom_call.1} parent=1 // pred_check
      _
    $region15: #{tpu_custom_call.1} parent=1 // pred_check_branch
      %43 = sbr.rel (0) target = $region17
    $region16: #{tpu_custom_call.1} parent=1 // pred_region
      %s45 = ssub.s32 256, 256
      %46 = vsyncadd [#allocation4], %s45
      %s48 = sshll.u32 [#allocation5], 4
      %s49 = int_to_ptr.vmem [resolvable:$true] %s48
      %51 = dma.vmem_to_hbm [thread:$0]  %s49, 256, %s2, [#allocation4]
    $region17: #{tpu_custom_call.1} parent=1 // pred_fallthru
      _
    // Predicated region
    $region18: #{tpu_custom_call.1} parent=1 // pred_check
      _
    $region19: #{tpu_custom_call.1} parent=1 // pred_check_branch
      %53 = sbr.rel (0) target = $region21
    $region20: #{tpu_custom_call.1} parent=1 // pred_region
      %54 = dma.done [#allocation4], 256
    $region21: #{tpu_custom_call.1} parent=1 // pred_fallthru
      _
    %55 = vsyncpa [#allocation3], 1
    %56 = vsyncpa [#allocation4], 1

</llo_original>
